<compile_context>
chip_gen: v7x
topology: tpu7x:2x2x1
jax: 0.10.0
libtpu: 0.0.40
codegen_flags: <defaults>
</compile_context>

<pallas_src>
import functools

import jax
import jax.numpy as jnp
import numpy as np
from jax import lax
from jax.experimental import pallas as pl
from jax.experimental.pallas import tpu as pltpu

_LANE = 128              # every last (lane) dim is padded to a multiple of this
_TILE_N = 256            # row / K tile for the large-graph path
_SMALL_FUSED_MAX = 256   # graphs padded to <= this many nodes use the fused call

_ACTIVATIONS = {
    "relu": lambda v: jnp.maximum(v, 0.0),
    "tanh": jnp.tanh,
    "sigmoid": jax.nn.sigmoid,
}


def _round_up(v, m):
    return (v + m - 1) // m * m


def _bytes(shape, dtype):
    n = 1
    for s in shape:
        n *= s
    return n * jnp.dtype(dtype).itemsize


def _compiler_params(dim_sems, block_bytes, scratch_bytes=0):
    """VMEM budget from actual tile sizes: 2x for double-buffered pipeline blocks,
    2x headroom, clamped to [16 MiB, 64 MiB] so it also fits v7x's physical VMEM."""
    est = 2 * block_bytes + scratch_bytes
    vmem = int(min(max(2 * est, 16 * 1024 * 1024), 64 * 1024 * 1024))
    return pltpu.CompilerParams(dimension_semantics=dim_sems, vmem_limit_bytes=vmem)


# ----------------------------- kernels ---------------------------------------

def _fused_small_kernel(a_ref, x_ref, *rest, n_layers, act, cdtype):
    """Whole forward in one invocation (small graphs):
    h = act(A @ (h @ W_l)) for every layer, then y = relu(h@W1+b1)@W2+b2."""
    gcn_w = rest[:n_layers]
    w1_ref, b1_ref, w2_ref, b2_ref, y_ref, h_ref = rest[n_layers:]
    a = a_ref[...]
    h = x_ref[...]
    for w_ref in gcn_w:
        xw = jnp.dot(h, w_ref[...], preferred_element_type=jnp.float32)
        h = act(jnp.dot(a, xw.astype(cdtype),
                        preferred_element_type=jnp.float32)).astype(cdtype)
    h_ref[...] = h
    z = jnp.maximum(
        jnp.dot(h, w1_ref[...], preferred_element_type=jnp.float32) + b1_ref[...], 0.0)
    y = jnp.dot(z.astype(cdtype), w2_ref[...],
                preferred_element_type=jnp.float32) + b2_ref[...]
    y_ref[...] = y.astype(y_ref.dtype)


def _project_kernel(x_ref, w_ref, o_ref):
    """Layer-0 GCN feature projection: o = x @ W (row-parallel over node tiles)."""
    o_ref[...] = jnp.dot(x_ref[...], w_ref[...],
                         preferred_element_type=jnp.float32).astype(o_ref.dtype)


def _agg_project_kernel(a_ref, xw_ref, wn_ref, xwn_ref, acc_ref, *, act, cdtype):
    """Intermediate layer, K-tiled: acc += A_blk @ XW_blk; at the last K step
    h = act(acc) and the NEXT layer's projection xw_next = h @ W_next is emitted
    (h itself never goes to HBM for intermediate layers)."""
    k = pl.program_id(1)

    @pl.when(k == 0)
    def _():
        acc_ref[...] = jnp.zeros_like(acc_ref)

    acc_ref[...] += jnp.dot(a_ref[...], xw_ref[...], preferred_element_type=jnp.float32)

    @pl.when(k == pl.num_programs(1) - 1)
    def _():
        h = act(acc_ref[...]).astype(cdtype)
        xwn_ref[...] = jnp.dot(h, wn_ref[...],
                               preferred_element_type=jnp.float32).astype(cdtype)


def _agg_readout_kernel(a_ref, xw_ref, w1_ref, b1_ref, w2_ref, b2_ref,
                        y_ref, h_ref, acc_ref, *, act, cdtype):
    """Last GCN layer, K-tiled, fused with the readout MLP in the epilogue."""
    k = pl.program_id(1)

    @pl.when(k == 0)
    def _():
        acc_ref[...] = jnp.zeros_like(acc_ref)

    acc_ref[...] += jnp.dot(a_ref[...], xw_ref[...], preferred_element_type=jnp.float32)

    @pl.when(k == pl.num_programs(1) - 1)
    def _():
        h = act(acc_ref[...])
        h_c = h.astype(cdtype)
        h_ref[...] = h_c
        z = jnp.maximum(
            jnp.dot(h_c, w1_ref[...], preferred_element_type=jnp.float32) + b1_ref[...],
            0.0)
        y = jnp.dot(z.astype(cdtype), w2_ref[...],
                    preferred_element_type=jnp.float32) + b2_ref[...]
        y_ref[...] = y.astype(y_ref.dtype)


# ----------------------------- pallas_call wrappers ---------------------------

def _fused_small(a_p, x_p, gcn_ws, w1, b1, w2, b2, act, cdtype):
    np_, _ = x_p.shape
    hp = gcn_ws[-1].shape[1]
    op = w2.shape[1]
    n_layers = len(gcn_ws)
    operands = [a_p, x_p, *gcn_ws, w1, b1, w2, b2]
    in_specs = [pl.BlockSpec(o.shape, lambda i: (0, 0)) for o in operands]
    out_specs = [pl.BlockSpec((np_, op), lambda i: (0, 0)),
                 pl.BlockSpec((np_, hp), lambda i: (0, 0))]
    out_shape = (jax.ShapeDtypeStruct((np_, op), jnp.float32),
                 jax.ShapeDtypeStruct((np_, hp), cdtype))
    blk = (sum(_bytes(o.shape, o.dtype) for o in operands)
           + _bytes((np_, op), jnp.float32) + _bytes((np_, hp), cdtype))
    return pl.pallas_call(
        functools.partial(_fused_small_kernel, n_layers=n_layers, act=act,
                          cdtype=cdtype),
        out_shape=out_shape,
        grid=(1,),
        in_specs=in_specs,
        out_specs=out_specs,
        compiler_params=_compiler_params(("arbitrary",), blk),
    )(*operands)


def _project(x_p, w, tn, cdtype):
    np_, fp = x_p.shape
    hp = w.shape[1]
    blk = _bytes((tn, fp), cdtype) + _bytes(w.shape, w.dtype) + _bytes((tn, hp), cdtype)
    return pl.pallas_call(
        _project_kernel,
        out_shape=jax.ShapeDtypeStruct((np_, hp), cdtype),
        grid=(np_ // tn,),
        in_specs=[pl.BlockSpec((tn, fp), lambda i: (i, 0)),
                  pl.BlockSpec((fp, hp), lambda i: (0, 0))],
        out_specs=pl.BlockSpec((tn, hp), lambda i: (i, 0)),
        compiler_params=_compiler_params(("parallel",), blk),
    )(x_p, w)


def _aggregate_project(a_p, xw, w_next, tn, tk, act, cdtype):
    np_ = a_p.shape[0]
    hp = xw.shape[1]
    hn = w_next.shape[1]
    blk = (_bytes((tn, tk), cdtype) + _bytes((tk, hp), cdtype)
           + _bytes(w_next.shape, w_next.dtype) + _bytes((tn, hn), cdtype))
    scratch = _bytes((tn, hp), jnp.float32)
    return pl.pallas_call(
        functools.partial(_agg_project_kernel, act=act, cdtype=cdtype),
        out_shape=jax.ShapeDtypeStruct((np_, hn), cdtype),
        grid=(np_ // tn, np_ // tk),
        in_specs=[pl.BlockSpec((tn, tk), lambda i, k: (i, k)),
                  pl.BlockSpec((tk, hp), lambda i, k: (k, 0)),
                  pl.BlockSpec(w_next.shape, lambda i, k: (0, 0))],
        out_specs=pl.BlockSpec((tn, hn), lambda i, k: (i, 0)),
        scratch_shapes=[pltpu.VMEM((tn, hp), jnp.float32)],
        compiler_params=_compiler_params(("parallel", "arbitrary"), blk, scratch),
    )(a_p, xw, w_next)


def _aggregate_readout(a_p, xw, w1, b1, w2, b2, tn, tk, act, cdtype):
    np_ = a_p.shape[0]
    hp = xw.shape[1]
    op = w2.shape[1]
    blk = (_bytes((tn, tk), cdtype) + _bytes((tk, hp), cdtype)
           + _bytes(w1.shape, w1.dtype) + _bytes(b1.shape, b1.dtype)
           + _bytes(w2.shape, w2.dtype) + _bytes(b2.shape, b2.dtype)
           + _bytes((tn, op), jnp.float32) + _bytes((tn, hp), cdtype))
    scratch = _bytes((tn, hp), jnp.float32)
    return pl.pallas_call(
        functools.partial(_agg_readout_kernel, act=act, cdtype=cdtype),
        out_shape=(jax.ShapeDtypeStruct((np_, op), jnp.float32),
                   jax.ShapeDtypeStruct((np_, hp), cdtype)),
        grid=(np_ // tn, np_ // tk),
        in_specs=[pl.BlockSpec((tn, tk), lambda i, k: (i, k)),
                  pl.BlockSpec((tk, hp), lambda i, k: (k, 0)),
                  pl.BlockSpec(w1.shape, lambda i, k: (0, 0)),
                  pl.BlockSpec(b1.shape, lambda i, k: (0, 0)),
                  pl.BlockSpec(w2.shape, lambda i, k: (0, 0)),
                  pl.BlockSpec(b2.shape, lambda i, k: (0, 0))],
        out_specs=[pl.BlockSpec((tn, op), lambda i, k: (i, 0)),
                   pl.BlockSpec((tn, hp), lambda i, k: (i, 0))],
        scratch_shapes=[pltpu.VMEM((tn, hp), jnp.float32)],
        compiler_params=_compiler_params(("parallel", "arbitrary"), blk, scratch),
    )(a_p, xw, w1, b1, w2, b2)


# ----------------------------- glue / wrapper ---------------------------------

def gcn_norm_dense(edge_index, edge_weight, num_nodes, padded_nodes, dtype):
    """Dense D^-1/2 (A + I) D^-1/2, built directly padded and in `dtype`.
    A_hat[dst, src] = norm of edge src->dst (torch_geometric GCNConv convention)."""
    src = edge_index[0].astype(jnp.int32)
    dst = edge_index[1].astype(jnp.int32)
    if edge_weight is None:
        edge_weight = jnp.ones(src.shape[0], jnp.float32)
    w = edge_weight.astype(jnp.float32)
    loops = jnp.arange(num_nodes, dtype=jnp.int32)
    src = jnp.concatenate([src, loops])
    dst = jnp.concatenate([dst, loops])
    w = jnp.concatenate([w, jnp.ones(num_nodes, jnp.float32)])
    deg = jnp.zeros((num_nodes,), jnp.float32).at[dst].add(w)
    dinv = jnp.where(deg > 0.0, lax.rsqrt(deg), 0.0)
    norm = (dinv[src] * w * dinv[dst]).astype(dtype)
    return jnp.zeros((padded_nodes, padded_nodes), dtype).at[dst, src].add(norm)


def gcn_decoder_forward(x, edge_index, edge_weight, params):
    """Mirrors GCNDecoder.forward (conv_type='gcn', eval mode -> dropout is a no-op).
    Returns (readout(h) of shape (N, horizon, output_size), last conv output (N, H)).
    The second output is in the kernel compute dtype; cast at the caller if needed."""
    meta = params["meta"]
    hidden = meta["hidden_size"]
    out_size = meta["output_size"]
    horizon = meta["horizon"]
    act = _ACTIVATIONS[meta["activation"]]
    cdtype = meta["compute_dtype"]
    gcn_ws = params["gcn_w"]
    n_layers = len(gcn_ws)

    n, f = x.shape
    fp = _round_up(f, _LANE)

    small = _round_up(n, _LANE) <= _SMALL_FUSED_MAX
    # Node dim padded to 128 (small) / 256 (tiled) multiples: lane-dense A loads,
    # full MXU contraction, and bf16 16-row sublane packing all satisfied.
    np_ = _round_up(n, _LANE) if small else _round_up(n, _TILE_N)

    a_p = gcn_norm_dense(edge_index, edge_weight, n, np_, cdtype)
    x_p = jnp.zeros((np_, fp), cdtype).at[:n, :f].set(x.astype(cdtype))

    if small:
        y_p, h_p = _fused_small(a_p, x_p, gcn_ws, params["w1"], params["b1"],
                                params["w2"], params["b2"], act, cdtype)
    else:
        tn = tk = _TILE_N
        xw = _project(x_p, gcn_ws[0], tn, cdtype)
        for l in range(n_layers - 1):
            xw = _aggregate_project(a_p, xw, gcn_ws[l + 1], tn, tk, act, cdtype)
        y_p, h_p = _aggregate_readout(a_p, xw, params["w1"], params["b1"],
                                      params["w2"], params["b2"], tn, tk, act, cdtype)

    y = y_p[:n, :horizon * out_size].reshape(n, horizon, out_size)
    h_out = h_p[:n, :hidden]
    return y, h_out


def gcn_decoder_reference(x, edge_index, edge_weight, params):
    """Pure-JAX f32 reference (unpadded weights) for correctness checking."""
    meta = params["meta"]
    ref = params["ref"]
    act = _ACTIVATIONS[meta["activation"]]
    n = x.shape[0]
    a = gcn_norm_dense(edge_index, edge_weight, n, n, jnp.float32)
    h = x.astype(jnp.float32)
    for w in ref["gcn_w"]:
        h = act(a @ (h @ w))
    z = jnp.maximum(h @ ref["w1"] + ref["b1"], 0.0)
    y = z @ ref["w2"] + ref["b2"]
    return y.reshape(n, meta["horizon"], meta["output_size"]), h


def init_params(key, input_size, hidden_size, output_size, horizon=1, n_layers=1,
                activation="relu", compute_dtype=jnp.bfloat16):
    """GCNConv glorot weights (bias=False) + PyTorch-Linear-style readout, zero-padded
    to 128-lane multiples and stored in `compute_dtype` (bf16 default: ~0.4% operand
    quantization, f32 MXU accumulation; pass jnp.float32 for full precision).
    Unpadded f32 copies are kept under params['ref'] for the reference check."""
    fp = _round_up(input_size, _LANE)
    hp = _round_up(hidden_size, _LANE)
    op = _round_up(output_size * horizon, _LANE)

    keys = jax.random.split(key, n_layers + 2)
    gcn_w, gcn_w_ref = [], []
    for l in range(n_layers):
        fan_in = input_size if l == 0 else hidden_size
        rows_p = fp if l == 0 else hp
        limit = (6.0 / (fan_in + hidden_size)) ** 0.5
        w = jax.random.uniform(keys[l], (fan_in, hidden_size), jnp.float32, -limit, limit)
        gcn_w_ref.append(w)
        gcn_w.append(jnp.zeros((rows_p, hp), compute_dtype)
                     .at[:fan_in, :hidden_size].set(w.astype(compute_dtype)))

    def linear(k, fan_in, fan_out, rows_p, cols_p):
        kw, kb = jax.random.split(k)
        bound = fan_in ** -0.5
        w = jax.random.uniform(kw, (fan_in, fan_out), jnp.float32, -bound, bound)
        b = jax.random.uniform(kb, (fan_out,), jnp.float32, -bound, bound)
        w_p = (jnp.zeros((rows_p, cols_p), compute_dtype)
               .at[:fan_in, :fan_out].set(w.astype(compute_dtype)))
        b_p = jnp.zeros((1, cols_p), jnp.float32).at[0, :fan_out].set(b)
        return w_p, b_p, w, b

    w1, b1, w1_ref, b1_ref = linear(keys[n_layers], hidden_size, hidden_size, hp, hp)
    w2, b2, w2_ref, b2_ref = linear(keys[n_layers + 1], hidden_size,
                                    output_size * horizon, hp, op)

    # TODO(synk): conv_type='gat'/'gatv2' attention convolutions and training-mode
    # dropout are not implemented; only the default 'gcn' inference path is covered.
    return {
        "gcn_w": gcn_w, "w1": w1, "b1": b1, "w2": w2, "b2": b2,
        "ref": {"gcn_w": gcn_w_ref, "w1": w1_ref, "b1": b1_ref,
                "w2": w2_ref, "b2": b2_ref},
        "meta": {"hidden_size": hidden_size, "output_size": output_size,
                 "horizon": horizon, "activation": activation,
                 "compute_dtype": compute_dtype},
    }


def _ring_graph(key, num_nodes):
    idx = jnp.arange(num_nodes, dtype=jnp.int32)
    nxt = (idx + 1) % num_nodes
    edge_index = jnp.stack([jnp.concatenate([idx, nxt]),
                            jnp.concatenate([nxt, idx])], axis=0)       # (2, 2N)
    edge_weight = jax.random.uniform(key, (edge_index.shape[1],), jnp.float32, 0.5, 1.5)
    return edge_index, edge_weight


def _to_f32(a):
    return np.asarray(jnp.asarray(a, jnp.float32))


if __name__ == "__main__":
    key = jax.random.PRNGKey(0)
    k1, k2, k3, k4, k5, k6 = jax.random.split(key, 6)

    # Case 1: tiny graph -> fully fused single pallas_call (grid=(1,)).
    # GCNDecoder(input_size=8, hidden_size=32, output_size=4, horizon=3, n_layers=1).
    n1 = 16
    x1 = jax.random.normal(k1, (n1, 8), jnp.float32)
    ei1, ew1 = _ring_graph(k2, n1)
    p1 = init_params(k3, 8, 32, 4, horizon=3, n_layers=1, activation="relu")
    y1, h1 = gcn_decoder_forward(x1, ei1, ew1, p1)
    y1, h1 = jax.block_until_ready(y1), jax.block_until_ready(h1)
    assert y1.shape == (n1, 3, 4), y1.shape
    assert h1.shape == (n1, 32), h1.shape
    y1_ref, h1_ref = gcn_decoder_reference(x1, ei1, ew1, p1)
    np.testing.assert_allclose(_to_f32(y1), _to_f32(y1_ref), rtol=8e-2, atol=8e-2)
    np.testing.assert_allclose(_to_f32(h1), _to_f32(h1_ref), rtol=8e-2, atol=8e-2)

    # Case 2: larger graph, 2 GCN layers -> K-tiled (row, K) grid path
    # (272 nodes pad to 512; grid (2, 2); next-layer projection fused into epilogue).
    n2 = 272
    x2 = jax.random.normal(k4, (n2, 8), jnp.float32)
    ei2, ew2 = _ring_graph(k5, n2)
    p2 = init_params(k6, 8, 32, 4, horizon=3, n_layers=2, activation="relu")
    y2, h2 = gcn_decoder_forward(x2, ei2, ew2, p2)
    y2, h2 = jax.block_until_ready(y2), jax.block_until_ready(h2)
    assert y2.shape == (n2, 3, 4), y2.shape
    assert h2.shape == (n2, 32), h2.shape
    y2_ref, h2_ref = gcn_decoder_reference(x2, ei2, ew2, p2)
    np.testing.assert_allclose(_to_f32(y2), _to_f32(y2_ref), rtol=8e-2, atol=8e-2)
    np.testing.assert_allclose(_to_f32(h2), _to_f32(h2_ref), rtol=8e-2, atol=8e-2)

    print("KERNEL_OK")
</pallas_src>

<mosaic_0001>
module attributes {stable_mosaic.version = 11 : i64} {
  func.func @_fused_small_kernel(%arg0: i32, %arg1: memref<128x128xbf16, #tpu.memory_space<vmem>>, %arg2: memref<128x128xbf16, #tpu.memory_space<vmem>>, %arg3: memref<128x128xbf16, #tpu.memory_space<vmem>>, %arg4: memref<128x128xbf16, #tpu.memory_space<vmem>>, %arg5: memref<1x128xf32, #tpu.memory_space<vmem>>, %arg6: memref<128x128xbf16, #tpu.memory_space<vmem>>, %arg7: memref<1x128xf32, #tpu.memory_space<vmem>>, %arg8: memref<128x128xf32, #tpu.memory_space<vmem>>, %arg9: memref<128x128xbf16, #tpu.memory_space<vmem>>) attributes {dimension_semantics = [#tpu.dimension_semantics<arbitrary>], iteration_bounds = array<i64: 1>, scalar_prefetch = 0 : i64, scratch_operands = 0 : i64, tpu.core_type = #tpu.core_type<tc>, window_params = [{pipeline_mode = #tpu.pipeline_mode<synchronous>, transform_indices = @transform_0, window_bounds = array<i64: 128, 128>}, {pipeline_mode = #tpu.pipeline_mode<synchronous>, transform_indices = @transform_1, window_bounds = array<i64: 128, 128>}, {pipeline_mode = #tpu.pipeline_mode<synchronous>, transform_indices = @transform_2, window_bounds = array<i64: 128, 128>}, {pipeline_mode = #tpu.pipeline_mode<synchronous>, transform_indices = @transform_3, window_bounds = array<i64: 128, 128>}, {pipeline_mode = #tpu.pipeline_mode<synchronous>, transform_indices = @transform_4, window_bounds = array<i64: 1, 128>}, {pipeline_mode = #tpu.pipeline_mode<synchronous>, transform_indices = @transform_5, window_bounds = array<i64: 128, 128>}, {pipeline_mode = #tpu.pipeline_mode<synchronous>, transform_indices = @transform_6, window_bounds = array<i64: 1, 128>}, {pipeline_mode = #tpu.pipeline_mode<synchronous>, transform_indices = @transform_7, window_bounds = array<i64: 128, 128>}, {pipeline_mode = #tpu.pipeline_mode<synchronous>, transform_indices = @transform_8, window_bounds = array<i64: 128, 128>}]} {
    %c0 = arith.constant 0 : index
    %c0_0 = arith.constant 0 : index
    %0 = vector.load %arg1[%c0, %c0_0] : memref<128x128xbf16, #tpu.memory_space<vmem>>, vector<128x128xbf16>
    %c0_1 = arith.constant 0 : index
    %c0_2 = arith.constant 0 : index
    %1 = vector.load %arg2[%c0_1, %c0_2] : memref<128x128xbf16, #tpu.memory_space<vmem>>, vector<128x128xbf16>
    %c0_3 = arith.constant 0 : index
    %c0_4 = arith.constant 0 : index
    %2 = vector.load %arg3[%c0_3, %c0_4] : memref<128x128xbf16, #tpu.memory_space<vmem>>, vector<128x128xbf16>
    %cst = arith.constant dense<0.000000e+00> : vector<128x128xf32>
    %3 = tpu.matmul %1, %2, %cst {dimension_numbers = #tpu.dot_dimension_numbers<[1], [0], [0], [1], [0, 0, 1, 1], [], []>} : vector<128x128xbf16>, vector<128x128xbf16>, vector<128x128xf32> -> vector<128x128xf32>
    %4 = arith.truncf %3 : vector<128x128xf32> to vector<128x128xbf16>
    %cst_5 = arith.constant dense<0.000000e+00> : vector<128x128xf32>
    %5 = tpu.matmul %0, %4, %cst_5 {dimension_numbers = #tpu.dot_dimension_numbers<[1], [0], [0], [1], [0, 0, 1, 1], [], []>} : vector<128x128xbf16>, vector<128x128xbf16>, vector<128x128xf32> -> vector<128x128xf32>
    %cst_6 = arith.constant 0.000000e+00 : f32
    %6 = vector.broadcast %cst_6 : f32 to vector<128x128xf32>
    %7 = arith.maximumf %5, %6 : vector<128x128xf32>
    %8 = arith.truncf %7 : vector<128x128xf32> to vector<128x128xbf16>
    %c0_7 = arith.constant 0 : index
    %c0_8 = arith.constant 0 : index
    %9 = vector.load %arg9[%c0_7, %c0_8] : memref<128x128xbf16, #tpu.memory_space<vmem>>, vector<128x128xbf16>
    tpu.vector_store %arg9[%c0_7, %c0_8], %8 {strides = array<i32>} : memref<128x128xbf16, #tpu.memory_space<vmem>>, vector<128x128xbf16>,
    %c0_9 = arith.constant 0 : index
    %c0_10 = arith.constant 0 : index
    %10 = vector.load %arg4[%c0_9, %c0_10] : memref<128x128xbf16, #tpu.memory_space<vmem>>, vector<128x128xbf16>
    %cst_11 = arith.constant dense<0.000000e+00> : vector<128x128xf32>
    %11 = tpu.matmul %8, %10, %cst_11 {dimension_numbers = #tpu.dot_dimension_numbers<[1], [0], [0], [1], [0, 0, 1, 1], [], []>} : vector<128x128xbf16>, vector<128x128xbf16>, vector<128x128xf32> -> vector<128x128xf32>
    %c0_12 = arith.constant 0 : index
    %c0_13 = arith.constant 0 : index
    %12 = vector.load %arg5[%c0_12, %c0_13] : memref<1x128xf32, #tpu.memory_space<vmem>>, vector<1x128xf32>
    %13 = vector.broadcast %12 : vector<1x128xf32> to vector<128x128xf32>
    %14 = arith.addf %11, %13 : vector<128x128xf32>
    %cst_14 = arith.constant 0.000000e+00 : f32
    %15 = vector.broadcast %cst_14 : f32 to vector<128x128xf32>
    %16 = arith.maximumf %14, %15 : vector<128x128xf32>
    %17 = arith.truncf %16 : vector<128x128xf32> to vector<128x128xbf16>
    %c0_15 = arith.constant 0 : index
    %c0_16 = arith.constant 0 : index
    %18 = vector.load %arg6[%c0_15, %c0_16] : memref<128x128xbf16, #tpu.memory_space<vmem>>, vector<128x128xbf16>
    %cst_17 = arith.constant dense<0.000000e+00> : vector<128x128xf32>
    %19 = tpu.matmul %17, %18, %cst_17 {dimension_numbers = #tpu.dot_dimension_numbers<[1], [0], [0], [1], [0, 0, 1, 1], [], []>} : vector<128x128xbf16>, vector<128x128xbf16>, vector<128x128xf32> -> vector<128x128xf32>
    %c0_18 = arith.constant 0 : index
    %c0_19 = arith.constant 0 : index
    %20 = vector.load %arg7[%c0_18, %c0_19] : memref<1x128xf32, #tpu.memory_space<vmem>>, vector<1x128xf32>
    %21 = vector.broadcast %20 : vector<1x128xf32> to vector<128x128xf32>
    %22 = arith.addf %19, %21 : vector<128x128xf32>
    %c0_20 = arith.constant 0 : index
    %c0_21 = arith.constant 0 : index
    %23 = vector.load %arg8[%c0_20, %c0_21] : memref<128x128xf32, #tpu.memory_space<vmem>>, vector<128x128xf32>
    tpu.vector_store %arg8[%c0_20, %c0_21], %22 {strides = array<i32>} : memref<128x128xf32, #tpu.memory_space<vmem>>, vector<128x128xf32>,
    return
  }
  func.func @transform_0(%arg0: i32) -> (i32, i32) {
    %c0_i32 = arith.constant 0 : i32
    %c0_i32_0 = arith.constant 0 : i32
    %c0_i32_1 = arith.constant 0 : i32
    return %c0_i32, %c0_i32_0 : i32, i32
  }
  func.func @transform_1(%arg0: i32) -> (i32, i32) {
    %c0_i32 = arith.constant 0 : i32
    %c0_i32_0 = arith.constant 0 : i32
    %c0_i32_1 = arith.constant 0 : i32
    return %c0_i32, %c0_i32_0 : i32, i32
  }
  func.func @transform_2(%arg0: i32) -> (i32, i32) {
    %c0_i32 = arith.constant 0 : i32
    %c0_i32_0 = arith.constant 0 : i32
    %c0_i32_1 = arith.constant 0 : i32
    return %c0_i32, %c0_i32_0 : i32, i32
  }
  func.func @transform_3(%arg0: i32) -> (i32, i32) {
    %c0_i32 = arith.constant 0 : i32
    %c0_i32_0 = arith.constant 0 : i32
    %c0_i32_1 = arith.constant 0 : i32
    return %c0_i32, %c0_i32_0 : i32, i32
  }
  func.func @transform_4(%arg0: i32) -> (i32, i32) {
    %c0_i32 = arith.constant 0 : i32
    %c0_i32_0 = arith.constant 0 : i32
    %c0_i32_1 = arith.constant 0 : i32
    return %c0_i32, %c0_i32_0 : i32, i32
  }
  func.func @transform_5(%arg0: i32) -> (i32, i32) {
    %c0_i32 = arith.constant 0 : i32
    %c0_i32_0 = arith.constant 0 : i32
    %c0_i32_1 = arith.constant 0 : i32
    return %c0_i32, %c0_i32_0 : i32, i32
  }
  func.func @transform_6(%arg0: i32) -> (i32, i32) {
    %c0_i32 = arith.constant 0 : i32
    %c0_i32_0 = arith.constant 0 : i32
    %c0_i32_1 = arith.constant 0 : i32
    return %c0_i32, %c0_i32_0 : i32, i32
  }
  func.func @transform_7(%arg0: i32) -> (i32, i32) {
    %c0_i32 = arith.constant 0 : i32
    %c0_i32_0 = arith.constant 0 : i32
    %c0_i32_1 = arith.constant 0 : i32
    return %c0_i32, %c0_i32_0 : i32, i32
  }
  func.func @transform_8(%arg0: i32) -> (i32, i32) {
    %c0_i32 = arith.constant 0 : i32
    %c0_i32_0 = arith.constant 0 : i32
    %c0_i32_1 = arith.constant 0 : i32
    return %c0_i32, %c0_i32_0 : i32, i32
  }
}

</mosaic_0001>

<llo_original>
// kernel: tpu_custom_call.1
$region0: #{tpu_custom_call.1}
  #allocation0 [shape = 'u32[]', space=smem, size = 0x4, offset = 0x4, fixed_abs, tag = 'smem constant byte address 0x4 - core index']
  #allocation1 [shape = 'u32[144,128]{1,0:T(1,128)}', space=vmem, size = 0x12000, scoped, tag = 'internal scratch']
  %s0 = inlined_call_operand.hbm [shape: bf16[128,128], index: 0, kind: input, shape index: {}]
  %s1 = inlined_call_operand.hbm [shape: bf16[128,128], index: 1, kind: input, shape index: {}]
  %s2 = inlined_call_operand.hbm [shape: bf16[128,128], index: 2, kind: input, shape index: {}]
  %s3 = inlined_call_operand.hbm [shape: bf16[128,128], index: 3, kind: input, shape index: {}]
  %s4 = inlined_call_operand.vmem [shape: f32[1,128], index: 4, kind: input, shape index: {}]
  %s5 = inlined_call_operand.hbm [shape: bf16[128,128], index: 5, kind: input, shape index: {}]
  %s6 = inlined_call_operand.vmem [shape: f32[1,128], index: 6, kind: input, shape index: {}]
  %s7 = inlined_call_operand.hbm [shape: f32[128,128], index: 7, kind: output, shape index: {0}]
  %s8 = inlined_call_operand.hbm [shape: bf16[128,128], index: 8, kind: output, shape index: {1}]
  %9 = xla_tuple %s7, %s8
  %s10 = sld [smem:[#allocation0]]
  $region66: #{tpu_custom_call.1} parent=0
    _
  %s12 = ssub.s32 1, %s10
  %s13 = scalar_select 0, %s12, %s10
  $region1: #{tpu_custom_call.1} parent=0
    #allocation2 [shape = 'u8[32768]{0}', space=vmem, size = 0x8000, scoped, tag = 'input window, operand 0, single buffered']
    #allocation3 [shape = 's32[1]{0}', space=sflag, size = 0x4, scoped, tag = 'scoped memory for tpu_custom_call.1']
    #allocation4 [shape = 's32[1]{0}', space=sflag, size = 0x4, scoped, tag = 'scoped memory for tpu_custom_call.1']
    #allocation5 [shape = 'u8[32768]{0}', space=vmem, size = 0x8000, scoped, tag = 'input window, operand 1, single buffered']
    #allocation6 [shape = 's32[1]{0}', space=sflag, size = 0x4, scoped, tag = 'scoped memory for tpu_custom_call.1']
    #allocation7 [shape = 'u8[32768]{0}', space=vmem, size = 0x8000, scoped, tag = 'input window, operand 2, single buffered']
    #allocation8 [shape = 'u8[32768]{0}', space=vmem, size = 0x8000, scoped, tag = 'input window, operand 3, single buffered']
    #allocation9 [shape = 's32[1]{0}', space=sflag, size = 0x4, scoped, tag = 'scoped memory for tpu_custom_call.1']
    #allocation10 [shape = 'u8[32768]{0}', space=vmem, size = 0x8000, scoped, tag = 'input window, operand 5, single buffered']
    #allocation11 [shape = 'u8[65536]{0}', space=vmem, size = 0x10000, scoped, tag = 'output window, operand 0, single buffered']
    #allocation12 [shape = 'u8[32768]{0}', space=vmem, size = 0x8000, scoped, tag = 'output window, operand 1, single buffered']
    #allocation13 [shape = 's32[1]{0}', space=sflag, size = 0x4, scoped, tag = 'scoped memory for tpu_custom_call.1']
    %14 = vsyncpa [#allocation3], 0
    %15 = vsyncpa [#allocation6], 0
    %16 = vsyncpa [#allocation9], 0
    %17 = vsyncpa [#allocation4], 0
    %18 = vsyncpa [#allocation13], 0
    // Predicated region
    $region2: #{tpu_custom_call.1} parent=1 // pred_check
      _
    $region3: #{tpu_custom_call.1} parent=1 // pred_check_branch
      %20 = sbr.rel (0) target = $region5
    $region4: #{tpu_custom_call.1} parent=1 // pred_region
      %s22 = ssub.s32 1024, 1024
      %23 = vsyncadd [#allocation3], %s22
      %s24 = sshll.u32 [#allocation2], 4
      %s25 = int_to_ptr.vmem [resolvable:$true] %s24
      %30 = dma.hbm_to_vmem [thread:$0]  %s0, 1024, %s25, [#allocation3], 64, 64, 4
    $region5: #{tpu_custom_call.1} parent=1 // pred_fallthru
      _
    // Predicated region
    $region6: #{tpu_custom_call.1} parent=1 // pred_check
      _
    $region7: #{tpu_custom_call.1} parent=1 // pred_check_branch
      %32 = sbr.rel (0) target = $region9
    $region8: #{tpu_custom_call.1} parent=1 // pred_region
      %s34 = ssub.s32 1024, 1024
      %35 = vsyncadd [#allocation6], %s34
      %s36 = sshll.u32 [#allocation5], 4
      %s37 = int_to_ptr.vmem [resolvable:$true] %s36
      %42 = dma.hbm_to_vmem [thread:$0]  %s1, 1024, %s37, [#allocation6], 64, 64, 4
    $region9: #{tpu_custom_call.1} parent=1 // pred_fallthru
      _
    // Predicated region
    $region10: #{tpu_custom_call.1} parent=1 // pred_check
      _
    $region11: #{tpu_custom_call.1} parent=1 // pred_check_branch
      %44 = sbr.rel (0) target = $region13
    $region12: #{tpu_custom_call.1} parent=1 // pred_region
      %s46 = ssub.s32 1024, 1024
      %47 = vsyncadd [#allocation6], %s46
      %s48 = sshll.u32 [#allocation7], 4
      %s49 = int_to_ptr.vmem [resolvable:$true] %s48
      %54 = dma.hbm_to_vmem [thread:$0]  %s2, 1024, %s49, [#allocation6], 64, 64, 4
    $region13: #{tpu_custom_call.1} parent=1 // pred_fallthru
      _
    // Predicated region
    $region14: #{tpu_custom_call.1} parent=1 // pred_check
      _
    $region15: #{tpu_custom_call.1} parent=1 // pred_check_branch
      %56 = sbr.rel (0) target = $region17
    $region16: #{tpu_custom_call.1} parent=1 // pred_region
      %s58 = ssub.s32 1024, 1024
      %59 = vsyncadd [#allocation9], %s58
      %s60 = sshll.u32 [#allocation8], 4
      %s61 = int_to_ptr.vmem [resolvable:$true] %s60
      %66 = dma.hbm_to_vmem [thread:$0]  %s3, 1024, %s61, [#allocation9], 64, 64, 4
    $region17: #{tpu_custom_call.1} parent=1 // pred_fallthru
      _
    // Predicated region
    $region18: #{tpu_custom_call.1} parent=1 // pred_check
      _
    $region19: #{tpu_custom_call.1} parent=1 // pred_check_branch
      %68 = sbr.rel (0) target = $region21
    $region20: #{tpu_custom_call.1} parent=1 // pred_region
      _
    $region21: #{tpu_custom_call.1} parent=1 // pred_fallthru
      _
    // Predicated region
    $region22: #{tpu_custom_call.1} parent=1 // pred_check
      _
    $region23: #{tpu_custom_call.1} parent=1 // pred_check_branch
      %70 = sbr.rel (0) target = $region25
    $region24: #{tpu_custom_call.1} parent=1 // pred_region
      %s72 = ssub.s32 1024, 1024
      %73 = vsyncadd [#allocation9], %s72
      %s74 = sshll.u32 [#allocation10], 4
      %s75 = int_to_ptr.vmem [resolvable:$true] %s74
      %80 = dma.hbm_to_vmem [thread:$0]  %s5, 1024, %s75, [#allocation9], 64, 64, 4
    $region25: #{tpu_custom_call.1} parent=1 // pred_fallthru
      _
    // Predicated region
    $region26: #{tpu_custom_call.1} parent=1 // pred_check
      _
    $region27: #{tpu_custom_call.1} parent=1 // pred_check_branch
      %82 = sbr.rel (0) target = $region29
    $region28: #{tpu_custom_call.1} parent=1 // pred_region
      _
    $region29: #{tpu_custom_call.1} parent=1 // pred_fallthru
      _
    // Predicated region
    $region30: #{tpu_custom_call.1} parent=1 // pred_check
      _
    $region31: #{tpu_custom_call.1} parent=1 // pred_check_branch
      %84 = sbr.rel (0) target = $region33
    $region32: #{tpu_custom_call.1} parent=1 // pred_region
      %85 = dma.done [#allocation3], 1024
    $region33: #{tpu_custom_call.1} parent=1 // pred_fallthru
      _
    // Predicated region
    $region34: #{tpu_custom_call.1} parent=1 // pred_check
      _
    $region35: #{tpu_custom_call.1} parent=1 // pred_check_branch
      %87 = sbr.rel (0) target = $region37
    $region36: #{tpu_custom_call.1} parent=1 // pred_region
      %88 = dma.done [#allocation6], 1024
    $region37: #{tpu_custom_call.1} parent=1 // pred_fallthru
      _
    // Predicated region
    $region38: #{tpu_custom_call.1} parent=1 // pred_check
      _
    $region39: #{tpu_custom_call.1} parent=1 // pred_check_branch
      %90 = sbr.rel (0) target = $region41
    $region40: #{tpu_custom_call.1} parent=1 // pred_region
      %91 = dma.done [#allocation6], 1024
    $region41: #{tpu_custom_call.1} parent=1 // pred_fallthru
      _
    // Predicated region
    $region42: #{tpu_custom_call.1} parent=1 // pred_check
      _
    $region43: #{tpu_custom_call.1} parent=1 // pred_check_branch
      %93 = sbr.rel (0) target = $region45
    $region44: #{tpu_custom_call.1} parent=1 // pred_region
      %94 = dma.done [#allocation9], 1024
    $region45: #{tpu_custom_call.1} parent=1 // pred_fallthru
      _
    // Predicated region
    $region46: #{tpu_custom_call.1} parent=1 // pred_check
      _
    $region47: #{tpu_custom_call.1} parent=1 // pred_check_branch
      %96 = sbr.rel (0) target = $region49
    $region48: #{tpu_custom_call.1} parent=1 // pred_region
      %97 = dma.done [#allocation9], 1024
    $region49: #{tpu_custom_call.1} parent=1 // pred_fallthru
      _
    %v99 = vld [vmem:[#allocation2] sm:$0xf]
    %v100 = vld [vmem:[#allocation2 + $0x4] sm:$0xf]
    %v101 = vld [vmem:[#allocation2 + $0x8] sm:$0xf]
    %v102 = vld [vmem:[#allocation2 + $0xc] sm:$0xf]
    %v103 = vld [vmem:[#allocation2 + $0x10] sm:$0xf]
    %v104 = vld [vmem:[#allocation2 + $0x14] sm:$0xf]
    %v105 = vld [vmem:[#allocation2 + $0x18] sm:$0xf]
    %v106 = vld [vmem:[#allocation2 + $0x1c] sm:$0xf]
    %v107 = vld [vmem:[#allocation2 + $0x20] sm:$0xf]
    %v108 = vld [vmem:[#allocation2 + $0x24] sm:$0xf]
    %v109 = vld [vmem:[#allocation2 + $0x28] sm:$0xf]
    %v110 = vld [vmem:[#allocation2 + $0x2c] sm:$0xf]
    %v111 = vld [vmem:[#allocation2 + $0x30] sm:$0xf]
    %v112 = vld [vmem:[#allocation2 + $0x34] sm:$0xf]
    %v113 = vld [vmem:[#allocation2 + $0x38] sm:$0xf]
    %v114 = vld [vmem:[#allocation2 + $0x3c] sm:$0xf]
    %v115 = vld [vmem:[#allocation5] sm:$0xf]
    %v116 = vld [vmem:[#allocation5 + $0x4] sm:$0xf]
    %v117 = vld [vmem:[#allocation5 + $0x8] sm:$0xf]
    %v118 = vld [vmem:[#allocation5 + $0xc] sm:$0xf]
    %v119 = vld [vmem:[#allocation5 + $0x10] sm:$0xf]
    %v120 = vld [vmem:[#allocation5 + $0x14] sm:$0xf]
    %v121 = vld [vmem:[#allocation5 + $0x18] sm:$0xf]
    %v122 = vld [vmem:[#allocation5 + $0x1c] sm:$0xf]
    %v123 = vld [vmem:[#allocation5 + $0x20] sm:$0xf]
    %v124 = vld [vmem:[#allocation5 + $0x24] sm:$0xf]
    %v125 = vld [vmem:[#allocation5 + $0x28] sm:$0xf]
    %v126 = vld [vmem:[#allocation5 + $0x2c] sm:$0xf]
    %v127 = vld [vmem:[#allocation5 + $0x30] sm:$0xf]
    %v128 = vld [vmem:[#allocation5 + $0x34] sm:$0xf]
    %v129 = vld [vmem:[#allocation5 + $0x38] sm:$0xf]
    %v130 = vld [vmem:[#allocation5 + $0x3c] sm:$0xf]
    %v131 = vld [vmem:[#allocation7] sm:$0xf]
    %v132 = vld [vmem:[#allocation7 + $0x4] sm:$0xf]
    %v133 = vld [vmem:[#allocation7 + $0x8] sm:$0xf]
    %v134 = vld [vmem:[#allocation7 + $0xc] sm:$0xf]
    %v135 = vld [vmem:[#allocation7 + $0x10] sm:$0xf]
    %v136 = vld [vmem:[#allocation7 + $0x14] sm:$0xf]
    %v137 = vld [vmem:[#allocation7 + $0x18] sm:$0xf]
    %v138 = vld [vmem:[#allocation7 + $0x1c] sm:$0xf]
    %v139 = vld [vmem:[#allocation7 + $0x20] sm:$0xf]
    %v140 = vld [vmem:[#allocation7 + $0x24] sm:$0xf]
    %v141 = vld [vmem:[#allocation7 + $0x28] sm:$0xf]
    %v142 = vld [vmem:[#allocation7 + $0x2c] sm:$0xf]
    %v143 = vld [vmem:[#allocation7 + $0x30] sm:$0xf]
    %v144 = vld [vmem:[#allocation7 + $0x34] sm:$0xf]
    %v145 = vld [vmem:[#allocation7 + $0x38] sm:$0xf]
    %v146 = vld [vmem:[#allocation7 + $0x3c] sm:$0xf]
    %v163 = vunpack.c.l.b16 %v115
    %v164 = vunpack.c.l.b16 %v116
    %v165 = vunpack.c.l.b16 %v117
    %v166 = vunpack.c.l.b16 %v118
    %v167 = vunpack.c.l.b16 %v119
    %v168 = vunpack.c.l.b16 %v120
    %v169 = vunpack.c.l.b16 %v121
    %v170 = vunpack.c.l.b16 %v122
    %v171 = vunpack.c.l.b16 %v123
    %v172 = vunpack.c.l.b16 %v124
    %v173 = vunpack.c.l.b16 %v125
    %v174 = vunpack.c.l.b16 %v126
    %v175 = vunpack.c.l.b16 %v127
    %v176 = vunpack.c.l.b16 %v128
    %v177 = vunpack.c.l.b16 %v129
    %v178 = vunpack.c.l.b16 %v130
    %v179 = vpack.c.b16 %v164, %v163
    %v180 = vpack.c.b16 %v166, %v165
    %v181 = vpack.c.b16 %v168, %v167
    %v182 = vpack.c.b16 %v170, %v169
    %v183 = vpack.c.b16 %v172, %v171
    %v184 = vpack.c.b16 %v174, %v173
    %v185 = vpack.c.b16 %v176, %v175
    %v186 = vpack.c.b16 %v178, %v177
    %v211 = vunpack.c.l.b16 %v131
    %v212 = vunpack.c.l.b16 %v132
    %v213 = vunpack.c.l.b16 %v133
    %v214 = vunpack.c.l.b16 %v134
    %v215 = vunpack.c.l.b16 %v135
    %v216 = vunpack.c.l.b16 %v136
    %v217 = vunpack.c.l.b16 %v137
    %v218 = vunpack.c.l.b16 %v138
    %v219 = vunpack.c.l.b16 %v139
    %v220 = vunpack.c.l.b16 %v140
    %v221 = vunpack.c.l.b16 %v141
    %v222 = vunpack.c.l.b16 %v142
    %v223 = vunpack.c.l.b16 %v143
    %v224 = vunpack.c.l.b16 %v144
    %v225 = vunpack.c.l.b16 %v145
    %v226 = vunpack.c.l.b16 %v146
    %v227 = vpack.c.b16 %v212, %v211
    %v228 = vpack.c.b16 %v214, %v213
    %v229 = vpack.c.b16 %v216, %v215
    %v230 = vpack.c.b16 %v218, %v217
    %v231 = vpack.c.b16 %v220, %v219
    %v232 = vpack.c.b16 %v222, %v221
    %v233 = vpack.c.b16 %v224, %v223
    %v234 = vpack.c.b16 %v226, %v225
    %243 = vmatprep.subr.bf16.mxu0 0
    %244 = vmatpush1.bf16.msra.mxu0 %v227
    %245 = vmatprep.subr.bf16.mxu0 0
    %246 = vmatpush1.bf16.msra.mxu0 %v228
    %247 = vmatprep.subr.bf16.mxu0 0
    %248 = vmatpush1.bf16.msra.mxu0 %v229
    %249 = vmatprep.subr.bf16.mxu0 0
    %250 = vmatpush1.bf16.msra.mxu0 %v230
    %251 = vmatprep.subr.bf16.mxu0 0
    %252 = vmatpush1.bf16.msra.mxu0 %v231
    %253 = vmatprep.subr.bf16.mxu0 0
    %254 = vmatpush1.bf16.msra.mxu0 %v232
    %255 = vmatprep.subr.bf16.mxu0 0
    %256 = vmatpush1.bf16.msra.mxu0 %v233
    %257 = vmatprep.subr.bf16.mxu0 0
    %258 = vmatpush1.bf16.msra.mxu0 %v234
    %259 = vmatprep.subr.bf16.mxu0 0
    %260 = vmatpush1.bf16.msra.mxu0 0
    %261 = vmatprep.subr.bf16.mxu0 0
    %262 = vmatpush1.bf16.msra.mxu0 0
    %263 = vmatprep.subr.bf16.mxu0 0
    %264 = vmatpush1.bf16.msra.mxu0 0
    %265 = vmatprep.subr.bf16.mxu0 0
    %266 = vmatpush1.bf16.msra.mxu0 0
    %267 = vmatprep.subr.bf16.mxu0 0
    %268 = vmatpush1.bf16.msra.mxu0 0
    %269 = vmatprep.subr.bf16.mxu0 0
    %270 = vmatpush1.bf16.msra.mxu0 0
    %271 = vmatprep.subr.bf16.mxu0 0
    %272 = vmatpush1.bf16.msra.mxu0 0
    %273 = vmatprep.subr.bf16.mxu0 0
    %274 = vmatpush1.bf16.msra.mxu0 0
    %275 = vmatprep.mubr.bf16.mxu0 0
    %276 = vmatmul.mubr.bf16.gmra.mrb[0].mxu0 %v179
    %v277 = vpop.f32.mrb[0].mxu0
    %v278 = vadd.f32 0.0, %v277
    %v279 = vpop.f32.mrb[0].mxu0
    %v280 = vpop.f32.mrb[0].mxu0
    %v281 = vadd.f32 0.0, %v280
    %v282 = vpop.f32.mrb[0].mxu0
    %283 = vmatprep.mubr.bf16.mxu0 0
    %284 = vmatmul.mubr.bf16.gmra.mrb[0].mxu0 %v180
    %v285 = vpop.f32.mrb[0].mxu0
    %v286 = vadd.f32 0.0, %v285
    %v287 = vpop.f32.mrb[0].mxu0
    %v288 = vpop.f32.mrb[0].mxu0
    %v289 = vadd.f32 0.0, %v288
    %v290 = vpop.f32.mrb[0].mxu0
    %291 = vmatprep.mubr.bf16.mxu0 0
    %292 = vmatmul.mubr.bf16.gmra.mrb[0].mxu0 %v181
    %v293 = vpop.f32.mrb[0].mxu0
    %v294 = vadd.f32 0.0, %v293
    %v295 = vpop.f32.mrb[0].mxu0
    %v296 = vpop.f32.mrb[0].mxu0
    %v297 = vadd.f32 0.0, %v296
    %v298 = vpop.f32.mrb[0].mxu0
    %299 = vmatprep.mubr.bf16.mxu0 0
    %300 = vmatmul.mubr.bf16.gmra.mrb[0].mxu0 %v182
    %v301 = vpop.f32.mrb[0].mxu0
    %v302 = vadd.f32 0.0, %v301
    %v303 = vpop.f32.mrb[0].mxu0
    %v304 = vpop.f32.mrb[0].mxu0
    %v305 = vadd.f32 0.0, %v304
    %v306 = vpop.f32.mrb[0].mxu0
    %307 = vmatprep.mubr.bf16.mxu0 0
    %308 = vmatmul.mubr.bf16.gmra.mrb[0].mxu0 %v183
    %v309 = vpop.f32.mrb[0].mxu0
    %v310 = vadd.f32 0.0, %v309
    %v311 = vpop.f32.mrb[0].mxu0
    %v312 = vpop.f32.mrb[0].mxu0
    %v313 = vadd.f32 0.0, %v312
    %v314 = vpop.f32.mrb[0].mxu0
    %315 = vmatprep.mubr.bf16.mxu0 0
    %316 = vmatmul.mubr.bf16.gmra.mrb[0].mxu0 %v184
    %v317 = vpop.f32.mrb[0].mxu0
    %v318 = vadd.f32 0.0, %v317
    %v319 = vpop.f32.mrb[0].mxu0
    %v320 = vpop.f32.mrb[0].mxu0
    %v321 = vadd.f32 0.0, %v320
    %v322 = vpop.f32.mrb[0].mxu0
    %323 = vmatprep.mubr.bf16.mxu0 0
    %324 = vmatmul.mubr.bf16.gmra.mrb[0].mxu0 %v185
    %v325 = vpop.f32.mrb[0].mxu0
    %v326 = vadd.f32 0.0, %v325
    %v327 = vpop.f32.mrb[0].mxu0
    %v328 = vpop.f32.mrb[0].mxu0
    %v329 = vadd.f32 0.0, %v328
    %v330 = vpop.f32.mrb[0].mxu0
    %331 = vmatprep.mubr.bf16.mxu0 0
    %332 = vmatmul.mubr.bf16.gmra.mrb[0].mxu0 %v186
    %v333 = vpop.f32.mrb[0].mxu0
    %v334 = vadd.f32 0.0, %v333
    %v335 = vpop.f32.mrb[0].mxu0
    %v336 = vpop.f32.mrb[0].mxu0
    %v337 = vadd.f32 0.0, %v336
    %v338 = vpop.f32.mrb[0].mxu0
    %339 = vdwg.mxu0
    %v340 = vpack.c.bf16 %v281, %v278
    %v341 = vpack.c.bf16 %v289, %v286
    %v342 = vpack.c.bf16 %v297, %v294
    %v343 = vpack.c.bf16 %v305, %v302
    %v344 = vpack.c.bf16 %v313, %v310
    %v345 = vpack.c.bf16 %v321, %v318
    %v346 = vpack.c.bf16 %v329, %v326
    %v347 = vpack.c.bf16 %v337, %v334
    %v364 = vunpack.c.l.b16 %v99
    %v365 = vunpack.c.l.b16 %v100
    %v366 = vunpack.c.l.b16 %v101
    %v367 = vunpack.c.l.b16 %v102
    %v368 = vunpack.c.l.b16 %v103
    %v369 = vunpack.c.l.b16 %v104
    %v370 = vunpack.c.l.b16 %v105
    %v371 = vunpack.c.l.b16 %v106
    %v372 = vunpack.c.l.b16 %v107
    %v373 = vunpack.c.l.b16 %v108
    %v374 = vunpack.c.l.b16 %v109
    %v375 = vunpack.c.l.b16 %v110
    %v376 = vunpack.c.l.b16 %v111
    %v377 = vunpack.c.l.b16 %v112
    %v378 = vunpack.c.l.b16 %v113
    %v379 = vunpack.c.l.b16 %v114
    %v380 = vpack.c.b16 %v365, %v364
    %v381 = vpack.c.b16 %v367, %v366
    %v382 = vpack.c.b16 %v369, %v368
    %v383 = vpack.c.b16 %v371, %v370
    %v384 = vpack.c.b16 %v373, %v372
    %v385 = vpack.c.b16 %v375, %v374
    %v386 = vpack.c.b16 %v377, %v376
    %v387 = vpack.c.b16 %v379, %v378
    %396 = vmatprep.subr.bf16.mxu0 0
    %397 = vmatpush1.bf16.msra.mxu0 %v340
    %398 = vmatprep.subr.bf16.mxu0 0
    %399 = vmatpush1.bf16.msra.mxu0 %v341
    %400 = vmatprep.subr.bf16.mxu0 0
    %401 = vmatpush1.bf16.msra.mxu0 %v342
    %402 = vmatprep.subr.bf16.mxu0 0
    %403 = vmatpush1.bf16.msra.mxu0 %v343
    %404 = vmatprep.subr.bf16.mxu0 0
    %405 = vmatpush1.bf16.msra.mxu0 %v344
    %406 = vmatprep.subr.bf16.mxu0 0
    %407 = vmatpush1.bf16.msra.mxu0 %v345
    %408 = vmatprep.subr.bf16.mxu0 0
    %409 = vmatpush1.bf16.msra.mxu0 %v346
    %410 = vmatprep.subr.bf16.mxu0 0
    %411 = vmatpush1.bf16.msra.mxu0 %v347
    %412 = vmatprep.subr.bf16.mxu0 0
    %413 = vmatpush1.bf16.msra.mxu0 0
    %414 = vmatprep.subr.bf16.mxu0 0
    %415 = vmatpush1.bf16.msra.mxu0 0
    %416 = vmatprep.subr.bf16.mxu0 0
    %417 = vmatpush1.bf16.msra.mxu0 0
    %418 = vmatprep.subr.bf16.mxu0 0
    %419 = vmatpush1.bf16.msra.mxu0 0
    %420 = vmatprep.subr.bf16.mxu0 0
    %421 = vmatpush1.bf16.msra.mxu0 0
    %422 = vmatprep.subr.bf16.mxu0 0
    %423 = vmatpush1.bf16.msra.mxu0 0
    %424 = vmatprep.subr.bf16.mxu0 0
    %425 = vmatpush1.bf16.msra.mxu0 0
    %426 = vmatprep.subr.bf16.mxu0 0
    %427 = vmatpush1.bf16.msra.mxu0 0
    %428 = vmatprep.mubr.bf16.mxu0 0
    %429 = vmatmul.mubr.bf16.gmra.mrb[0].mxu0 %v380
    %v430 = vpop.f32.mrb[0].mxu0
    %v431 = vadd.f32 0.0, %v430
    %v432 = vpop.f32.mrb[0].mxu0
    %v433 = vpop.f32.mrb[0].mxu0
    %v434 = vadd.f32 0.0, %v433
    %v435 = vpop.f32.mrb[0].mxu0
    %436 = vmatprep.mubr.bf16.mxu0 0
    %437 = vmatmul.mubr.bf16.gmra.mrb[0].mxu0 %v381
    %v438 = vpop.f32.mrb[0].mxu0
    %v439 = vadd.f32 0.0, %v438
    %v440 = vpop.f32.mrb[0].mxu0
    %v441 = vpop.f32.mrb[0].mxu0
    %v442 = vadd.f32 0.0, %v441
    %v443 = vpop.f32.mrb[0].mxu0
    %444 = vmatprep.mubr.bf16.mxu0 0
    %445 = vmatmul.mubr.bf16.gmra.mrb[0].mxu0 %v382
    %v446 = vpop.f32.mrb[0].mxu0
    %v447 = vadd.f32 0.0, %v446
    %v448 = vpop.f32.mrb[0].mxu0
    %v449 = vpop.f32.mrb[0].mxu0
    %v450 = vadd.f32 0.0, %v449
    %v451 = vpop.f32.mrb[0].mxu0
    %452 = vmatprep.mubr.bf16.mxu0 0
    %453 = vmatmul.mubr.bf16.gmra.mrb[0].mxu0 %v383
    %v454 = vpop.f32.mrb[0].mxu0
    %v455 = vadd.f32 0.0, %v454
    %v456 = vpop.f32.mrb[0].mxu0
    %v457 = vpop.f32.mrb[0].mxu0
    %v458 = vadd.f32 0.0, %v457
    %v459 = vpop.f32.mrb[0].mxu0
    %460 = vmatprep.mubr.bf16.mxu0 0
    %461 = vmatmul.mubr.bf16.gmra.mrb[0].mxu0 %v384
    %v462 = vpop.f32.mrb[0].mxu0
    %v463 = vadd.f32 0.0, %v462
    %v464 = vpop.f32.mrb[0].mxu0
    %v465 = vpop.f32.mrb[0].mxu0
    %v466 = vadd.f32 0.0, %v465
    %v467 = vpop.f32.mrb[0].mxu0
    %468 = vmatprep.mubr.bf16.mxu0 0
    %469 = vmatmul.mubr.bf16.gmra.mrb[0].mxu0 %v385
    %v470 = vpop.f32.mrb[0].mxu0
    %v471 = vadd.f32 0.0, %v470
    %v472 = vpop.f32.mrb[0].mxu0
    %v473 = vpop.f32.mrb[0].mxu0
    %v474 = vadd.f32 0.0, %v473
    %v475 = vpop.f32.mrb[0].mxu0
    %476 = vmatprep.mubr.bf16.mxu0 0
    %477 = vmatmul.mubr.bf16.gmra.mrb[0].mxu0 %v386
    %v478 = vpop.f32.mrb[0].mxu0
    %v479 = vadd.f32 0.0, %v478
    %v480 = vpop.f32.mrb[0].mxu0
    %v481 = vpop.f32.mrb[0].mxu0
    %v482 = vadd.f32 0.0, %v481
    %v483 = vpop.f32.mrb[0].mxu0
    %484 = vmatprep.mubr.bf16.mxu0 0
    %485 = vmatmul.mubr.bf16.gmra.mrb[0].mxu0 %v387
    %v486 = vpop.f32.mrb[0].mxu0
    %v487 = vadd.f32 0.0, %v486
    %v488 = vpop.f32.mrb[0].mxu0
    %v489 = vpop.f32.mrb[0].mxu0
    %v490 = vadd.f32 0.0, %v489
    %v491 = vpop.f32.mrb[0].mxu0
    %492 = vdwg.mxu0
    %v493 = vmax.f32 %v431, 0.0
    %v494 = vmax.f32 %v434, 0.0
    %v495 = vmax.f32 %v439, 0.0
    %v496 = vmax.f32 %v442, 0.0
    %v497 = vmax.f32 %v447, 0.0
    %v498 = vmax.f32 %v450, 0.0
    %v499 = vmax.f32 %v455, 0.0
    %v500 = vmax.f32 %v458, 0.0
    %v501 = vmax.f32 %v463, 0.0
    %v502 = vmax.f32 %v466, 0.0
    %v503 = vmax.f32 %v471, 0.0
    %v504 = vmax.f32 %v474, 0.0
    %v505 = vmax.f32 %v479, 0.0
    %v506 = vmax.f32 %v482, 0.0
    %v507 = vmax.f32 %v487, 0.0
    %v508 = vmax.f32 %v490, 0.0
    %v509 = vpack.c.bf16 %v494, %v493
    %v510 = vpack.c.bf16 %v496, %v495
    %v511 = vpack.c.bf16 %v498, %v497
    %v512 = vpack.c.bf16 %v500, %v499
    %v513 = vpack.c.bf16 %v502, %v501
    %v514 = vpack.c.bf16 %v504, %v503
    %v515 = vpack.c.bf16 %v506, %v505
    %v516 = vpack.c.bf16 %v508, %v507
    %v525 = vunpack.c.l.b16 %v509
    %v526 = vunpack.c.h.b16 %v509
    %v527 = vunpack.c.l.b16 %v510
    %v528 = vunpack.c.h.b16 %v510
    %v529 = vunpack.c.l.b16 %v511
    %v530 = vunpack.c.h.b16 %v511
    %v531 = vunpack.c.l.b16 %v512
    %v532 = vunpack.c.h.b16 %v512
    %v533 = vunpack.c.l.b16 %v513
    %v534 = vunpack.c.h.b16 %v513
    %v535 = vunpack.c.l.b16 %v514
    %v536 = vunpack.c.h.b16 %v514
    %v537 = vunpack.c.l.b16 %v515
    %v538 = vunpack.c.h.b16 %v515
    %v539 = vunpack.c.l.b16 %v516
    %v540 = vunpack.c.h.b16 %v516
    %v541 = vpack.c.b16 %v525, %v525
    %v542 = vpack.c.b16 %v526, %v526
    %v543 = vpack.c.b16 %v527, %v527
    %v544 = vpack.c.b16 %v528, %v528
    %v545 = vpack.c.b16 %v529, %v529
    %v546 = vpack.c.b16 %v530, %v530
    %v547 = vpack.c.b16 %v531, %v531
    %v548 = vpack.c.b16 %v532, %v532
    %v549 = vpack.c.b16 %v533, %v533
    %v550 = vpack.c.b16 %v534, %v534
    %v551 = vpack.c.b16 %v535, %v535
    %v552 = vpack.c.b16 %v536, %v536
    %v553 = vpack.c.b16 %v537, %v537
    %v554 = vpack.c.b16 %v538, %v538
    %v555 = vpack.c.b16 %v539, %v539
    %v556 = vpack.c.b16 %v540, %v540
    %573 = vst [vmem:[#allocation12] sm:$0xf] %v541
    %574 = vst [vmem:[#allocation12 + $0x4] sm:$0xf] %v542
    %575 = vst [vmem:[#allocation12 + $0x8] sm:$0xf] %v543
    %576 = vst [vmem:[#allocation12 + $0xc] sm:$0xf] %v544
    %577 = vst [vmem:[#allocation12 + $0x10] sm:$0xf] %v545
    %578 = vst [vmem:[#allocation12 + $0x14] sm:$0xf] %v546
    %579 = vst [vmem:[#allocation12 + $0x18] sm:$0xf] %v547
    %580 = vst [vmem:[#allocation12 + $0x1c] sm:$0xf] %v548
    %581 = vst [vmem:[#allocation12 + $0x20] sm:$0xf] %v549
    %582 = vst [vmem:[#allocation12 + $0x24] sm:$0xf] %v550
    %583 = vst [vmem:[#allocation12 + $0x28] sm:$0xf] %v551
    %584 = vst [vmem:[#allocation12 + $0x2c] sm:$0xf] %v552
    %585 = vst [vmem:[#allocation12 + $0x30] sm:$0xf] %v553
    %586 = vst [vmem:[#allocation12 + $0x34] sm:$0xf] %v554
    %587 = vst [vmem:[#allocation12 + $0x38] sm:$0xf] %v555
    %588 = vst [vmem:[#allocation12 + $0x3c] sm:$0xf] %v556
    %v589 = vld [vmem:[#allocation8] sm:$0xf]
    %v590 = vld [vmem:[#allocation8 + $0x4] sm:$0xf]
    %v591 = vld [vmem:[#allocation8 + $0x8] sm:$0xf]
    %v592 = vld [vmem:[#allocation8 + $0xc] sm:$0xf]
    %v593 = vld [vmem:[#allocation8 + $0x10] sm:$0xf]
    %v594 = vld [vmem:[#allocation8 + $0x14] sm:$0xf]
    %v595 = vld [vmem:[#allocation8 + $0x18] sm:$0xf]
    %v596 = vld [vmem:[#allocation8 + $0x1c] sm:$0xf]
    %v597 = vld [vmem:[#allocation8 + $0x20] sm:$0xf]
    %v598 = vld [vmem:[#allocation8 + $0x24] sm:$0xf]
    %v599 = vld [vmem:[#allocation8 + $0x28] sm:$0xf]
    %v600 = vld [vmem:[#allocation8 + $0x2c] sm:$0xf]
    %v601 = vld [vmem:[#allocation8 + $0x30] sm:$0xf]
    %v602 = vld [vmem:[#allocation8 + $0x34] sm:$0xf]
    %v603 = vld [vmem:[#allocation8 + $0x38] sm:$0xf]
    %v604 = vld [vmem:[#allocation8 + $0x3c] sm:$0xf]
    %v605 = vld [vmem:[%s4] sm:$0x1]
    %v607 = vlaneseq
    %v608 = vshrl.u32 %v607, 7
    %v609 = vsub.s32 0, %v608
    %v610 = vrot.slane %v605, %v609
    %v628 = vunpack.c.l.b16 %v589
    %v629 = vunpack.c.l.b16 %v590
    %v630 = vunpack.c.l.b16 %v591
    %v631 = vunpack.c.l.b16 %v592
    %v632 = vunpack.c.l.b16 %v593
    %v633 = vunpack.c.l.b16 %v594
    %v634 = vunpack.c.l.b16 %v595
    %v635 = vunpack.c.l.b16 %v596
    %v636 = vunpack.c.l.b16 %v597
    %v637 = vunpack.c.l.b16 %v598
    %v638 = vunpack.c.l.b16 %v599
    %v639 = vunpack.c.l.b16 %v600
    %v640 = vunpack.c.l.b16 %v601
    %v641 = vunpack.c.l.b16 %v602
    %v642 = vunpack.c.l.b16 %v603
    %v643 = vunpack.c.l.b16 %v604
    %v644 = vpack.c.b16 %v629, %v628
    %v645 = vpack.c.b16 %v631, %v630
    %v646 = vpack.c.b16 %v633, %v632
    %v647 = vpack.c.b16 %v635, %v634
    %v648 = vpack.c.b16 %v637, %v636
    %v649 = vpack.c.b16 %v639, %v638
    %v650 = vpack.c.b16 %v641, %v640
    %v651 = vpack.c.b16 %v643, %v642
    %660 = vmatprep.subr.bf16.mxu0 0
    %661 = vmatpush1.bf16.msra.mxu0 %v644
    %662 = vmatprep.subr.bf16.mxu0 0
    %663 = vmatpush1.bf16.msra.mxu0 %v645
    %664 = vmatprep.subr.bf16.mxu0 0
    %665 = vmatpush1.bf16.msra.mxu0 %v646
    %666 = vmatprep.subr.bf16.mxu0 0
    %667 = vmatpush1.bf16.msra.mxu0 %v647
    %668 = vmatprep.subr.bf16.mxu0 0
    %669 = vmatpush1.bf16.msra.mxu0 %v648
    %670 = vmatprep.subr.bf16.mxu0 0
    %671 = vmatpush1.bf16.msra.mxu0 %v649
    %672 = vmatprep.subr.bf16.mxu0 0
    %673 = vmatpush1.bf16.msra.mxu0 %v650
    %674 = vmatprep.subr.bf16.mxu0 0
    %675 = vmatpush1.bf16.msra.mxu0 %v651
    %676 = vmatprep.subr.bf16.mxu0 0
    %677 = vmatpush1.bf16.msra.mxu0 0
    %678 = vmatprep.subr.bf16.mxu0 0
    %679 = vmatpush1.bf16.msra.mxu0 0
    %680 = vmatprep.subr.bf16.mxu0 0
    %681 = vmatpush1.bf16.msra.mxu0 0
    %682 = vmatprep.subr.bf16.mxu0 0
    %683 = vmatpush1.bf16.msra.mxu0 0
    %684 = vmatprep.subr.bf16.mxu0 0
    %685 = vmatpush1.bf16.msra.mxu0 0
    %686 = vmatprep.subr.bf16.mxu0 0
    %687 = vmatpush1.bf16.msra.mxu0 0
    %688 = vmatprep.subr.bf16.mxu0 0
    %689 = vmatpush1.bf16.msra.mxu0 0
    %690 = vmatprep.subr.bf16.mxu0 0
    %691 = vmatpush1.bf16.msra.mxu0 0
    %692 = vmatprep.mubr.bf16.mxu0 0
    %693 = vmatmul.mubr.bf16.gmra.mrb[0].mxu0 %v509
    %v694 = vpop.f32.mrb[0].mxu0
    %v695 = vadd.f32 %v610, %v694
    %v696 = vpop.f32.mrb[0].mxu0
    %v697 = vpop.f32.mrb[0].mxu0
    %v698 = vadd.f32 %v610, %v697
    %v699 = vpop.f32.mrb[0].mxu0
    %700 = vmatprep.mubr.bf16.mxu0 0
    %701 = vmatmul.mubr.bf16.gmra.mrb[0].mxu0 %v510
    %v702 = vpop.f32.mrb[0].mxu0
    %v703 = vadd.f32 %v610, %v702
    %v704 = vpop.f32.mrb[0].mxu0
    %v705 = vpop.f32.mrb[0].mxu0
    %v706 = vadd.f32 %v610, %v705
    %v707 = vpop.f32.mrb[0].mxu0
    %708 = vmatprep.mubr.bf16.mxu0 0
    %709 = vmatmul.mubr.bf16.gmra.mrb[0].mxu0 %v511
    %v710 = vpop.f32.mrb[0].mxu0
    %v711 = vadd.f32 %v610, %v710
    %v712 = vpop.f32.mrb[0].mxu0
    %v713 = vpop.f32.mrb[0].mxu0
    %v714 = vadd.f32 %v610, %v713
    %v715 = vpop.f32.mrb[0].mxu0
    %716 = vmatprep.mubr.bf16.mxu0 0
    %717 = vmatmul.mubr.bf16.gmra.mrb[0].mxu0 %v512
    %v718 = vpop.f32.mrb[0].mxu0
    %v719 = vadd.f32 %v610, %v718
    %v720 = vpop.f32.mrb[0].mxu0
    %v721 = vpop.f32.mrb[0].mxu0
    %v722 = vadd.f32 %v610, %v721
    %v723 = vpop.f32.mrb[0].mxu0
    %724 = vmatprep.mubr.bf16.mxu0 0
    %725 = vmatmul.mubr.bf16.gmra.mrb[0].mxu0 %v513
    %v726 = vpop.f32.mrb[0].mxu0
    %v727 = vadd.f32 %v610, %v726
    %v728 = vpop.f32.mrb[0].mxu0
    %v729 = vpop.f32.mrb[0].mxu0
    %v730 = vadd.f32 %v610, %v729
    %v731 = vpop.f32.mrb[0].mxu0
    %732 = vmatprep.mubr.bf16.mxu0 0
    %733 = vmatmul.mubr.bf16.gmra.mrb[0].mxu0 %v514
    %v734 = vpop.f32.mrb[0].mxu0
    %v735 = vadd.f32 %v610, %v734
    %v736 = vpop.f32.mrb[0].mxu0
    %v737 = vpop.f32.mrb[0].mxu0
    %v738 = vadd.f32 %v610, %v737
    %v739 = vpop.f32.mrb[0].mxu0
    %740 = vmatprep.mubr.bf16.mxu0 0
    %741 = vmatmul.mubr.bf16.gmra.mrb[0].mxu0 %v515
    %v742 = vpop.f32.mrb[0].mxu0
    %v743 = vadd.f32 %v610, %v742
    %v744 = vpop.f32.mrb[0].mxu0
    %v745 = vpop.f32.mrb[0].mxu0
    %v746 = vadd.f32 %v610, %v745
    %v747 = vpop.f32.mrb[0].mxu0
    %748 = vmatprep.mubr.bf16.mxu0 0
    %749 = vmatmul.mubr.bf16.gmra.mrb[0].mxu0 %v516
    %v750 = vpop.f32.mrb[0].mxu0
    %v751 = vadd.f32 %v610, %v750
    %v752 = vpop.f32.mrb[0].mxu0
    %v753 = vpop.f32.mrb[0].mxu0
    %v754 = vadd.f32 %v610, %v753
    %v755 = vpop.f32.mrb[0].mxu0
    %756 = vdwg.mxu0
    %v757 = vmax.f32 %v695, 0.0
    %v758 = vmax.f32 %v698, 0.0
    %v759 = vmax.f32 %v703, 0.0
    %v760 = vmax.f32 %v706, 0.0
    %v761 = vmax.f32 %v711, 0.0
    %v762 = vmax.f32 %v714, 0.0
    %v763 = vmax.f32 %v719, 0.0
    %v764 = vmax.f32 %v722, 0.0
    %v765 = vmax.f32 %v727, 0.0
    %v766 = vmax.f32 %v730, 0.0
    %v767 = vmax.f32 %v735, 0.0
    %v768 = vmax.f32 %v738, 0.0
    %v769 = vmax.f32 %v743, 0.0
    %v770 = vmax.f32 %v746, 0.0
    %v771 = vmax.f32 %v751, 0.0
    %v772 = vmax.f32 %v754, 0.0
    %v773 = vpack.c.bf16 %v758, %v757
    %v774 = vpack.c.bf16 %v760, %v759
    %v775 = vpack.c.bf16 %v762, %v761
    %v776 = vpack.c.bf16 %v764, %v763
    %v777 = vpack.c.bf16 %v766, %v765
    %v778 = vpack.c.bf16 %v768, %v767
    %v779 = vpack.c.bf16 %v770, %v769
    %v780 = vpack.c.bf16 %v772, %v771
    %v781 = vld [vmem:[#allocation10] sm:$0xf]
    %v782 = vld [vmem:[#allocation10 + $0x4] sm:$0xf]
    %v783 = vld [vmem:[#allocation10 + $0x8] sm:$0xf]
    %v784 = vld [vmem:[#allocation10 + $0xc] sm:$0xf]
    %v785 = vld [vmem:[#allocation10 + $0x10] sm:$0xf]
    %v786 = vld [vmem:[#allocation10 + $0x14] sm:$0xf]
    %v787 = vld [vmem:[#allocation10 + $0x18] sm:$0xf]
    %v788 = vld [vmem:[#allocation10 + $0x1c] sm:$0xf]
    %v789 = vld [vmem:[#allocation10 + $0x20] sm:$0xf]
    %v790 = vld [vmem:[#allocation10 + $0x24] sm:$0xf]
    %v791 = vld [vmem:[#allocation10 + $0x28] sm:$0xf]
    %v792 = vld [vmem:[#allocation10 + $0x2c] sm:$0xf]
    %v793 = vld [vmem:[#allocation10 + $0x30] sm:$0xf]
    %v794 = vld [vmem:[#allocation10 + $0x34] sm:$0xf]
    %v795 = vld [vmem:[#allocation10 + $0x38] sm:$0xf]
    %v796 = vld [vmem:[#allocation10 + $0x3c] sm:$0xf]
    %v797 = vld [vmem:[%s6] sm:$0x1]
    %v799 = vlaneseq
    %v800 = vshrl.u32 %v799, 7
    %v801 = vsub.s32 0, %v800
    %v802 = vrot.slane %v797, %v801
    %v820 = vunpack.c.l.b16 %v781
    %v821 = vunpack.c.l.b16 %v782
    %v822 = vunpack.c.l.b16 %v783
    %v823 = vunpack.c.l.b16 %v784
    %v824 = vunpack.c.l.b16 %v785
    %v825 = vunpack.c.l.b16 %v786
    %v826 = vunpack.c.l.b16 %v787
    %v827 = vunpack.c.l.b16 %v788
    %v828 = vunpack.c.l.b16 %v789
    %v829 = vunpack.c.l.b16 %v790
    %v830 = vunpack.c.l.b16 %v791
    %v831 = vunpack.c.l.b16 %v792
    %v832 = vunpack.c.l.b16 %v793
    %v833 = vunpack.c.l.b16 %v794
    %v834 = vunpack.c.l.b16 %v795
    %v835 = vunpack.c.l.b16 %v796
    %v836 = vpack.c.b16 %v821, %v820
    %v837 = vpack.c.b16 %v823, %v822
    %v838 = vpack.c.b16 %v825, %v824
    %v839 = vpack.c.b16 %v827, %v826
    %v840 = vpack.c.b16 %v829, %v828
    %v841 = vpack.c.b16 %v831, %v830
    %v842 = vpack.c.b16 %v833, %v832
    %v843 = vpack.c.b16 %v835, %v834
    %852 = vmatprep.subr.bf16.mxu0 0
    %853 = vmatpush1.bf16.msra.mxu0 %v836
    %854 = vmatprep.subr.bf16.mxu0 0
    %855 = vmatpush1.bf16.msra.mxu0 %v837
    %856 = vmatprep.subr.bf16.mxu0 0
    %857 = vmatpush1.bf16.msra.mxu0 %v838
    %858 = vmatprep.subr.bf16.mxu0 0
    %859 = vmatpush1.bf16.msra.mxu0 %v839
    %860 = vmatprep.subr.bf16.mxu0 0
    %861 = vmatpush1.bf16.msra.mxu0 %v840
    %862 = vmatprep.subr.bf16.mxu0 0
    %863 = vmatpush1.bf16.msra.mxu0 %v841
    %864 = vmatprep.subr.bf16.mxu0 0
    %865 = vmatpush1.bf16.msra.mxu0 %v842
    %866 = vmatprep.subr.bf16.mxu0 0
    %867 = vmatpush1.bf16.msra.mxu0 %v843
    %868 = vmatprep.subr.bf16.mxu0 0
    %869 = vmatpush1.bf16.msra.mxu0 0
    %870 = vmatprep.subr.bf16.mxu0 0
    %871 = vmatpush1.bf16.msra.mxu0 0
    %872 = vmatprep.subr.bf16.mxu0 0
    %873 = vmatpush1.bf16.msra.mxu0 0
    %874 = vmatprep.subr.bf16.mxu0 0
    %875 = vmatpush1.bf16.msra.mxu0 0
    %876 = vmatprep.subr.bf16.mxu0 0
    %877 = vmatpush1.bf16.msra.mxu0 0
    %878 = vmatprep.subr.bf16.mxu0 0
    %879 = vmatpush1.bf16.msra.mxu0 0
    %880 = vmatprep.subr.bf16.mxu0 0
    %881 = vmatpush1.bf16.msra.mxu0 0
    %882 = vmatprep.subr.bf16.mxu0 0
    %883 = vmatpush1.bf16.msra.mxu0 0
    %884 = vmatprep.mubr.bf16.mxu0 0
    %885 = vmatmul.mubr.bf16.gmra.mrb[0].mxu0 %v773
    %v886 = vpop.f32.mrb[0].mxu0
    %v887 = vadd.f32 %v802, %v886
    %v888 = vpop.f32.mrb[0].mxu0
    %v889 = vpop.f32.mrb[0].mxu0
    %v890 = vadd.f32 %v802, %v889
    %v891 = vpop.f32.mrb[0].mxu0
    %892 = vmatprep.mubr.bf16.mxu0 0
    %893 = vmatmul.mubr.bf16.gmra.mrb[0].mxu0 %v774
    %v894 = vpop.f32.mrb[0].mxu0
    %v895 = vadd.f32 %v802, %v894
    %v896 = vpop.f32.mrb[0].mxu0
    %v897 = vpop.f32.mrb[0].mxu0
    %v898 = vadd.f32 %v802, %v897
    %v899 = vpop.f32.mrb[0].mxu0
    %900 = vmatprep.mubr.bf16.mxu0 0
    %901 = vmatmul.mubr.bf16.gmra.mrb[0].mxu0 %v775
    %v902 = vpop.f32.mrb[0].mxu0
    %v903 = vadd.f32 %v802, %v902
    %v904 = vpop.f32.mrb[0].mxu0
    %v905 = vpop.f32.mrb[0].mxu0
    %v906 = vadd.f32 %v802, %v905
    %v907 = vpop.f32.mrb[0].mxu0
    %908 = vmatprep.mubr.bf16.mxu0 0
    %909 = vmatmul.mubr.bf16.gmra.mrb[0].mxu0 %v776
    %v910 = vpop.f32.mrb[0].mxu0
    %v911 = vadd.f32 %v802, %v910
    %v912 = vpop.f32.mrb[0].mxu0
    %v913 = vpop.f32.mrb[0].mxu0
    %v914 = vadd.f32 %v802, %v913
    %v915 = vpop.f32.mrb[0].mxu0
    %916 = vmatprep.mubr.bf16.mxu0 0
    %917 = vmatmul.mubr.bf16.gmra.mrb[0].mxu0 %v777
    %v918 = vpop.f32.mrb[0].mxu0
    %v919 = vadd.f32 %v802, %v918
    %v920 = vpop.f32.mrb[0].mxu0
    %v921 = vpop.f32.mrb[0].mxu0
    %v922 = vadd.f32 %v802, %v921
    %v923 = vpop.f32.mrb[0].mxu0
    %924 = vmatprep.mubr.bf16.mxu0 0
    %925 = vmatmul.mubr.bf16.gmra.mrb[0].mxu0 %v778
    %v926 = vpop.f32.mrb[0].mxu0
    %v927 = vadd.f32 %v802, %v926
    %v928 = vpop.f32.mrb[0].mxu0
    %v929 = vpop.f32.mrb[0].mxu0
    %v930 = vadd.f32 %v802, %v929
    %v931 = vpop.f32.mrb[0].mxu0
    %932 = vmatprep.mubr.bf16.mxu0 0
    %933 = vmatmul.mubr.bf16.gmra.mrb[0].mxu0 %v779
    %v934 = vpop.f32.mrb[0].mxu0
    %v935 = vadd.f32 %v802, %v934
    %v936 = vpop.f32.mrb[0].mxu0
    %v937 = vpop.f32.mrb[0].mxu0
    %v938 = vadd.f32 %v802, %v937
    %v939 = vpop.f32.mrb[0].mxu0
    %940 = vmatprep.mubr.bf16.mxu0 0
    %941 = vmatmul.mubr.bf16.gmra.mrb[0].mxu0 %v780
    %v942 = vpop.f32.mrb[0].mxu0
    %v943 = vadd.f32 %v802, %v942
    %v944 = vpop.f32.mrb[0].mxu0
    %v945 = vpop.f32.mrb[0].mxu0
    %v946 = vadd.f32 %v802, %v945
    %v947 = vpop.f32.mrb[0].mxu0
    %948 = vdwg.mxu0
    %949 = vst [vmem:[#allocation11] sm:$0xff] %v887
    %950 = vst [vmem:[#allocation11 + $0x8] sm:$0xff] %v890
    %951 = vst [vmem:[#allocation11 + $0x10] sm:$0xff] %v895
    %952 = vst [vmem:[#allocation11 + $0x18] sm:$0xff] %v898
    %953 = vst [vmem:[#allocation11 + $0x20] sm:$0xff] %v903
    %954 = vst [vmem:[#allocation11 + $0x28] sm:$0xff] %v906
    %955 = vst [vmem:[#allocation11 + $0x30] sm:$0xff] %v911
    %956 = vst [vmem:[#allocation11 + $0x38] sm:$0xff] %v914
    %957 = vst [vmem:[#allocation11 + $0x40] sm:$0xff] %v919
    %958 = vst [vmem:[#allocation11 + $0x48] sm:$0xff] %v922
    %959 = vst [vmem:[#allocation11 + $0x50] sm:$0xff] %v927
    %960 = vst [vmem:[#allocation11 + $0x58] sm:$0xff] %v930
    %961 = vst [vmem:[#allocation11 + $0x60] sm:$0xff] %v935
    %962 = vst [vmem:[#allocation11 + $0x68] sm:$0xff] %v938
    %963 = vst [vmem:[#allocation11 + $0x70] sm:$0xff] %v943
    %964 = vst [vmem:[#allocation11 + $0x78] sm:$0xff] %v946
    // Predicated region
    $region50: #{tpu_custom_call.1} parent=1 // pred_check
      _
    $region51: #{tpu_custom_call.1} parent=1 // pred_check_branch
      %966 = sbr.rel (0) target = $region53
    $region52: #{tpu_custom_call.1} parent=1 // pred_region
      %s968 = ssub.s32 2048, 2048
      %969 = vsyncadd [#allocation4], %s968
      %s970 = sshll.u32 [#allocation11], 4
      %s971 = int_to_ptr.vmem [resolvable:$true] %s970
      %976 = dma.vmem_to_hbm [thread:$0]  %s971, 2048, %s7, [#allocation4], 128, 128, 8
    $region53: #{tpu_custom_call.1} parent=1 // pred_fallthru
      _
    // Predicated region
    $region54: #{tpu_custom_call.1} parent=1 // pred_check
      _
    $region55: #{tpu_custom_call.1} parent=1 // pred_check_branch
      %978 = sbr.rel (0) target = $region57
    $region56: #{tpu_custom_call.1} parent=1 // pred_region
      %s980 = ssub.s32 1024, 1024
      %981 = vsyncadd [#allocation13], %s980
      %s982 = sshll.u32 [#allocation12], 4
      %s983 = int_to_ptr.vmem [resolvable:$true] %s982
      %988 = dma.vmem_to_hbm [thread:$0]  %s983, 1024, %s8, [#allocation13], 64, 64, 4
    $region57: #{tpu_custom_call.1} parent=1 // pred_fallthru
      _
    // Predicated region
    $region58: #{tpu_custom_call.1} parent=1 // pred_check
      _
    $region59: #{tpu_custom_call.1} parent=1 // pred_check_branch
      %990 = sbr.rel (0) target = $region61
    $region60: #{tpu_custom_call.1} parent=1 // pred_region
      %991 = dma.done [#allocation4], 2048
    $region61: #{tpu_custom_call.1} parent=1 // pred_fallthru
      _
    // Predicated region
    $region62: #{tpu_custom_call.1} parent=1 // pred_check
      _
    $region63: #{tpu_custom_call.1} parent=1 // pred_check_branch
      %993 = sbr.rel (0) target = $region65
    $region64: #{tpu_custom_call.1} parent=1 // pred_region
      %994 = dma.done [#allocation13], 1024
    $region65: #{tpu_custom_call.1} parent=1 // pred_fallthru
      _
    %995 = vsyncpa [#allocation3], 1
    %996 = vsyncpa [#allocation6], 1
    %997 = vsyncpa [#allocation9], 1
    %998 = vsyncpa [#allocation4], 1
    %999 = vsyncpa [#allocation13], 1

</llo_original>
